<compile_context>
chip_gen: v7x
topology: tpu7x:2x2x1
jax: 0.10.0
libtpu: 0.0.40
codegen_flags: <defaults>
</compile_context>

<pallas_src>
import functools
import math

import numpy as np
import jax
import jax.numpy as jnp
from jax import lax
from jax.experimental import pallas as pl
from jax.experimental.pallas import tpu as pltpu


# ----------------------------------------------------------------------------- kernel
def _triplet_row_kernel(xf_ref, sqr_ref, sqc_ref, tr_ref, tc_ref, pm_ref,
                        hinge_ref, prec_ref, *, margin, tm, n):
    """One row tile: squared dists -> hardest negative -> hinge / prec row sums."""
    i = pl.program_id(0)

    xf = xf_ref[...]                                   # (n, Dp)  resident features
    if tm == n:                                        # single tile covers everything
        xt = xf
    else:                                              # anchor rows = sublane slice of
        row0 = pl.multiple_of(i * tm, tm)              # the ONE resident copy of x
        xt = xf_ref[pl.ds(row0, tm), :]

    # Row tile of the squared distance matrix.  Contract the last dim of BOTH
    # operands so the MXU handles the "transpose" (no XLU x.T materialization).
    gram = lax.dot_general(xt, xf, (((1,), (1,)), ((), ())),
                           preferred_element_type=jnp.float32)        # (tm, n)
    d2 = sqr_ref[...] + sqc_ref[...] - 2.0 * gram                     # (tm, n) f32

    # Hardest (min) negative per anchor on SQUARED distances (min commutes with the
    # monotone clamp+sqrt) -> only (tm, 1) sqrts for the negatives.
    neg = tr_ref[...] != tc_ref[...]                                  # (tm, n)
    min_neg_sq = jnp.min(jnp.where(neg, d2, jnp.inf), axis=1, keepdims=True)
    dist_an = jnp.sqrt(jnp.maximum(min_neg_sq, 1e-12))                # (tm, 1)

    # Within-tile block (holds every anchor/positive pair of these rows because the
    # tile covers whole K-groups): a slice of the d2 we ALREADY computed — no second
    # MXU pass.  For multi-tile runs tm is a multiple of 128, so the lane slice is
    # 128-aligned.
    if tm == n:
        d2_d = d2
    else:
        col0 = pl.multiple_of(i * tm, tm)
        d2_d = lax.dynamic_slice_in_dim(d2, col0, tm, axis=1)         # (tm, tm)

    pm = pm_ref[0]                                                    # (tm, tm) 0/1 mask
    dist_ap = jnp.sqrt(jnp.maximum(d2_d, 1e-12))                      # (tm, tm)

    # MarginRankingLoss(margin) with y = 1: max(0, dist_ap - dist_an + margin);
    # prec counts dist_an > dist_ap over the (anchor, positive) pairs.
    hinge = jnp.maximum(dist_ap - dist_an + margin, 0.0)              # (tm, tm)
    hit = (dist_an > dist_ap).astype(jnp.float32)                     # (tm, tm)

    # Lane-dense per-row sums via tiny ones-matmuls on the MXU instead of XLU
    # cross-lane reduces + 1-lane masked stores.
    ones_row = jnp.ones((1, tm), jnp.float32)
    dims = (((1,), (1,)), ((), ()))
    hinge_ref[...] = lax.dot_general(
        ones_row, pm * hinge, dims,
        preferred_element_type=jnp.float32).reshape(1, 1, tm)
    prec_ref[...] = lax.dot_general(
        ones_row, pm * hit, dims,
        preferred_element_type=jnp.float32).reshape(1, 1, tm)


# ------------------------------------------------------------------------- host helpers
def _device_kind():
    try:
        return jax.devices()[0].device_kind.lower()
    except Exception:
        return ""


def _vmem_capacity_bytes():
    try:
        return int(pltpu.get_tpu_info().vmem_capacity_bytes)
    except Exception:
        # v7x has 64 MiB / TensorCore, v5e/v6e have 128 MiB.
        return 64 * 2**20 if "7" in _device_kind() else 128 * 2**20


def _choose_row_tile(n, k, cap, want_multi_step):
    """Row tile: divides N, covers whole K-groups, 128-lane aligned when tiled."""
    k = max(int(k), 1)
    lane_group = 128 * k // math.gcd(128, k)          # lcm(128, K)
    multi = [t for t in range(lane_group, min(n - 1, cap) + 1, lane_group)
             if n % t == 0]
    if want_multi_step and multi:                     # v7x: feed both TensorCores
        return max(multi)
    if n <= cap:                                      # biggest tile = whole batch
        return n
    if multi:
        return max(multi)
    # TODO(synk): n > cap with no aligned divisor -> one oversized tile; the
    # column-tiled 2-D-grid variant is the proper fix for very large batches.
    return n


def _pair_mask_blocks(n, k, tm, npk):
    """Stacked diagonal (tm, tm) blocks of the global (anchor, positive) 0/1 mask:
    same index K-group, strictly upper-triangular, anchor index < P*K."""
    g = n // tm
    idx = np.arange(n)
    blocks = np.zeros((g, tm, tm), np.float32)
    for b in range(g):
        r = idx[b * tm:(b + 1) * tm][:, None]
        c = idx[b * tm:(b + 1) * tm][None, :]
        blocks[b] = ((r // k == c // k) & (c > r) & (r < npk)).astype(np.float32)
    return jnp.asarray(blocks)


# ------------------------------------------------------------------------------ wrapper
def triplet_loss(x, targets, *, margin=0.0, num_instances=0, use_semi=True,
                 matmul_dtype=jnp.bfloat16):
    """Returns (loss, prec) matching TripletLoss.forward."""
    n, d = x.shape
    k = int(num_instances)

    x = x.astype(jnp.float32)
    t = targets.astype(jnp.int32)

    if not use_semi:
        # TODO(synk): batch-hard branch kept in plain JAX only (not exercised below).
        sq = jnp.sum(x * x, axis=1, keepdims=True)
        d2 = sq + sq.T - 2.0 * (x @ x.T)
        dist = jnp.sqrt(jnp.clip(d2, 1e-12))
        same = t.reshape(n, 1) == t.reshape(1, n)
        dist_ap = jnp.max(jnp.where(same, dist, -jnp.inf), axis=1)
        dist_an = jnp.min(jnp.where(same, jnp.inf, dist), axis=1)
        loss = jnp.mean(jnp.maximum(dist_ap - dist_an + margin, 0.0))
        prec = jnp.mean((dist_an > dist_ap).astype(jnp.float32))
        return loss, prec

    p = n // k
    npk = p * k
    m = p * (k * (k - 1) // 2)                # number of (anchor, positive) pairs

    kind = _device_kind()
    cap = 128 if "v5" in kind else 256        # v5e MXU is 128x128: tm>128 buys nothing
    want_multi = "7" in kind                  # v7x: 2 TensorCores per chip
    tm = _choose_row_tile(n, k, cap, want_multi)
    grid_n = n // tm

    # Precomputed small inputs (review: pass row norms instead of recomputing).
    sq = jnp.sum(x * x, axis=1)
    sq_row = sq.reshape(n, 1)
    sq_col = sq.reshape(1, n)
    t_row = t.reshape(n, 1)
    t_col = t.reshape(1, n)
    pm_blocks = _pair_mask_blocks(n, k, tm, npk)

    # Zero-pad D to a lane multiple (exact for gram & norms) and cast MXU operands.
    d_pad = d if d % 128 == 0 else (d + 127) // 128 * 128
    x_mm = x if d_pad == d else jnp.pad(x, ((0, 0), (0, d_pad - d)))
    x_mm = x_mm.astype(matmul_dtype)

    # Per-generation VMEM budget: ~48 MiB on 64-MiB v7x, 96 MiB on v5e/v6e.
    vmem_limit = int(min(96 * 2**20, 3 * _vmem_capacity_bytes() // 4))

    kernel = functools.partial(_triplet_row_kernel,
                               margin=float(margin), tm=tm, n=n)

    hinge_rows, prec_rows = pl.pallas_call(
        kernel,
        grid=(grid_n,),
        out_shape=(jax.ShapeDtypeStruct((grid_n, 1, tm), jnp.float32),
                   jax.ShapeDtypeStruct((grid_n, 1, tm), jnp.float32)),
        in_specs=[
            pl.BlockSpec((n, d_pad), lambda i: (0, 0)),     # x, resident (MXU operand)
            pl.BlockSpec((tm, 1), lambda i: (i, 0)),        # row squared norms
            pl.BlockSpec((1, n), lambda i: (0, 0)),         # column squared norms
            pl.BlockSpec((tm, 1), lambda i: (i, 0)),        # row labels
            pl.BlockSpec((1, n), lambda i: (0, 0)),         # column labels
            pl.BlockSpec((1, tm, tm), lambda i: (i, 0, 0)),  # static pair-mask block
        ],
        out_specs=(
            pl.BlockSpec((1, 1, tm), lambda i: (i, 0, 0)),  # lane-dense hinge sums
            pl.BlockSpec((1, 1, tm), lambda i: (i, 0, 0)),  # lane-dense prec counts
        ),
        compiler_params=pltpu.CompilerParams(
            dimension_semantics=("parallel",),
            vmem_limit_bytes=vmem_limit,
        ),
    )(x_mm, sq_row, sq_col, t_row, t_col, pm_blocks)

    loss = jnp.sum(hinge_rows) / m
    prec = jnp.sum(prec_rows) / m
    return loss, prec


# ---------------------------------------------------------------------------- reference
def triplet_loss_ref(x, targets, *, margin, num_instances):
    """Pure-JAX reference mirroring the PyTorch semantics (use_semi=True)."""
    n = x.shape[0]
    K = num_instances
    P = n // K
    sq = jnp.sum(x * x, axis=1, keepdims=True)
    d2 = sq + sq.T - 2.0 * (x @ x.T)
    dist = jnp.sqrt(jnp.clip(d2, 1e-12))
    same = targets.reshape(n, 1) == targets.reshape(1, n)
    dist_ap, dist_an = [], []
    for i in range(P):
        for j in range(K):
            row = dist[i * K + j]
            neg_min = jnp.min(jnp.where(same[i * K + j], jnp.inf, row))
            for pair in range(j + 1, K):
                dist_ap.append(row[i * K + pair])
                dist_an.append(neg_min)
    dist_ap = jnp.stack(dist_ap)
    dist_an = jnp.stack(dist_an)
    loss = jnp.mean(jnp.maximum(dist_ap - dist_an + margin, 0.0))
    prec = jnp.mean((dist_an > dist_ap).astype(jnp.float32))
    return loss, prec


if __name__ == "__main__":
    # Small, deterministic example: P=2 identities, K=4 instances each, D=32 features.
    N, D, K = 8, 32, 4
    MARGIN = 0.3

    key = jax.random.PRNGKey(0)
    x = jax.random.normal(key, (N, D), dtype=jnp.float32)
    targets = jnp.asarray([0, 0, 0, 0, 1, 1, 1, 1], dtype=jnp.int32)

    loss_gold, prec_gold = triplet_loss_ref(x, targets, margin=MARGIN,
                                            num_instances=K)

    # Exact path (f32 MXU operands) — tight tolerance vs. the reference.
    loss, prec = triplet_loss(x, targets, margin=MARGIN, num_instances=K,
                              use_semi=True, matmul_dtype=jnp.float32)
    loss = jax.block_until_ready(loss)
    prec = jax.block_until_ready(prec)
    np.testing.assert_allclose(np.asarray(loss), np.asarray(loss_gold),
                               rtol=1e-5, atol=1e-5)
    np.testing.assert_allclose(np.asarray(prec), np.asarray(prec_gold),
                               rtol=1e-5, atol=1e-5)

    # Fast path (default bf16 MXU operands, f32 accumulate / norms) — loose check.
    loss_bf, prec_bf = triplet_loss(x, targets, margin=MARGIN, num_instances=K,
                                    use_semi=True)
    loss_bf = jax.block_until_ready(loss_bf)
    prec_bf = jax.block_until_ready(prec_bf)
    np.testing.assert_allclose(np.asarray(loss_bf), np.asarray(loss_gold),
                               rtol=3e-2, atol=3e-2)
    assert np.isfinite(np.asarray(prec_bf)) and 0.0 <= float(prec_bf) <= 1.0

    print("KERNEL_OK")
</pallas_src>

<mosaic_0001>
module attributes {stable_mosaic.version = 11 : i64} {
  func.func @_triplet_row_kernel(%arg0: i32, %arg1: memref<8x128xf32, #tpu.memory_space<vmem>>, %arg2: memref<8x1xf32, #tpu.memory_space<vmem>>, %arg3: memref<1x8xf32, #tpu.memory_space<vmem>>, %arg4: memref<8x1xi32, #tpu.memory_space<vmem>>, %arg5: memref<1x8xi32, #tpu.memory_space<vmem>>, %arg6: memref<1x8x8xf32, #tpu.memory_space<vmem>>, %arg7: memref<1x1x8xf32, #tpu.memory_space<vmem>>, %arg8: memref<1x1x8xf32, #tpu.memory_space<vmem>>) attributes {dimension_semantics = [#tpu.dimension_semantics<parallel>], iteration_bounds = array<i64: 1>, scalar_prefetch = 0 : i64, scratch_operands = 0 : i64, tpu.core_type = #tpu.core_type<tc>, window_params = [{pipeline_mode = #tpu.pipeline_mode<synchronous>, transform_indices = @transform_0, window_bounds = array<i64: 8, 128>}, {transform_indices = @transform_1, window_bounds = array<i64: 8, 1>}, {pipeline_mode = #tpu.pipeline_mode<synchronous>, transform_indices = @transform_2, window_bounds = array<i64: 1, 8>}, {transform_indices = @transform_3, window_bounds = array<i64: 8, 1>}, {pipeline_mode = #tpu.pipeline_mode<synchronous>, transform_indices = @transform_4, window_bounds = array<i64: 1, 8>}, {transform_indices = @transform_5, window_bounds = array<i64: 1, 8, 8>}, {transform_indices = @transform_6, window_bounds = array<i64: 1, 1, 8>}, {transform_indices = @transform_7, window_bounds = array<i64: 1, 1, 8>}]} {
    %c0 = arith.constant 0 : index
    %c0_0 = arith.constant 0 : index
    %0 = vector.load %arg1[%c0, %c0_0] : memref<8x128xf32, #tpu.memory_space<vmem>>, vector<8x128xf32>
    %cst = arith.constant dense<0.000000e+00> : vector<8x8xf32>
    %1 = tpu.matmul %0, %0, %cst {dimension_numbers = #tpu.dot_dimension_numbers<[1], [1], [0], [0], [0, 0, 1, 0], [], []>} : vector<8x128xf32>, vector<8x128xf32>, vector<8x8xf32> -> vector<8x8xf32>
    %c0_1 = arith.constant 0 : index
    %c0_2 = arith.constant 0 : index
    %2 = vector.load %arg2[%c0_1, %c0_2] : memref<8x1xf32, #tpu.memory_space<vmem>>, vector<8x1xf32>
    %c0_3 = arith.constant 0 : index
    %c0_4 = arith.constant 0 : index
    %3 = vector.load %arg3[%c0_3, %c0_4] : memref<1x8xf32, #tpu.memory_space<vmem>>, vector<1x8xf32>
    %4 = vector.broadcast %2 : vector<8x1xf32> to vector<8x8xf32>
    %5 = vector.broadcast %3 : vector<1x8xf32> to vector<8x8xf32>
    %6 = arith.addf %4, %5 : vector<8x8xf32>
    %cst_5 = arith.constant 2.000000e+00 : f32
    %7 = vector.broadcast %cst_5 : f32 to vector<8x8xf32>
    %8 = arith.mulf %7, %1 : vector<8x8xf32>
    %9 = arith.subf %6, %8 : vector<8x8xf32>
    %c0_6 = arith.constant 0 : index
    %c0_7 = arith.constant 0 : index
    %10 = vector.load %arg4[%c0_6, %c0_7] : memref<8x1xi32, #tpu.memory_space<vmem>>, vector<8x1xi32>
    %c0_8 = arith.constant 0 : index
    %c0_9 = arith.constant 0 : index
    %11 = vector.load %arg5[%c0_8, %c0_9] : memref<1x8xi32, #tpu.memory_space<vmem>>, vector<1x8xi32>
    %12 = vector.broadcast %10 : vector<8x1xi32> to vector<8x8xi32>
    %13 = vector.broadcast %11 : vector<1x8xi32> to vector<8x8xi32>
    %14 = arith.cmpi ne, %12, %13 : vector<8x8xi32>
    %cst_10 = arith.constant 0x7F800000 : f32
    %15 = vector.broadcast %cst_10 : f32 to vector<8x8xf32>
    %16 = arith.select %14, %9, %15 : vector<8x8xi1>, vector<8x8xf32>
    %cst_11 = arith.constant dense<0x7F800000> : vector<8xf32>
    %17 = vector.multi_reduction <minimumf>, %16, %cst_11 [1] : vector<8x8xf32> to vector<8xf32>
    %18 = vector.shape_cast %17 : vector<8xf32> to vector<8x1xf32>
    %cst_12 = arith.constant 9.99999996E-13 : f32
    %19 = vector.broadcast %cst_12 : f32 to vector<8x1xf32>
    %20 = arith.maximumf %18, %19 : vector<8x1xf32>
    %21 = math.sqrt %20 : vector<8x1xf32>
    %c0_13 = arith.constant 0 : index
    %c0_14 = arith.constant 0 : index
    %c0_15 = arith.constant 0 : index
    %22 = vector.load %arg6[%c0_13, %c0_14, %c0_15] : memref<1x8x8xf32, #tpu.memory_space<vmem>>, vector<1x8x8xf32>
    %23 = vector.shape_cast %22 : vector<1x8x8xf32> to vector<8x8xf32>
    %cst_16 = arith.constant 9.99999996E-13 : f32
    %24 = vector.broadcast %cst_16 : f32 to vector<8x8xf32>
    %25 = arith.maximumf %9, %24 : vector<8x8xf32>
    %26 = math.sqrt %25 : vector<8x8xf32>
    %27 = vector.broadcast %21 : vector<8x1xf32> to vector<8x8xf32>
    %28 = arith.subf %26, %27 : vector<8x8xf32>
    %cst_17 = arith.constant 3.000000e-01 : f32
    %29 = vector.broadcast %cst_17 : f32 to vector<8x8xf32>
    %30 = arith.addf %28, %29 : vector<8x8xf32>
    %cst_18 = arith.constant 0.000000e+00 : f32
    %31 = vector.broadcast %cst_18 : f32 to vector<8x8xf32>
    %32 = arith.maximumf %30, %31 : vector<8x8xf32>
    %33 = vector.broadcast %21 : vector<8x1xf32> to vector<8x8xf32>
    %34 = arith.cmpf ogt, %33, %26 : vector<8x8xf32>
    %35 = arith.extui %34 : vector<8x8xi1> to vector<8x8xi32>
    %36 = arith.sitofp %35 : vector<8x8xi32> to vector<8x8xf32>
    %cst_19 = arith.constant 1.000000e+00 : f32
    %37 = vector.broadcast %cst_19 : f32 to vector<1x8xf32>
    %38 = arith.mulf %23, %32 : vector<8x8xf32>
    %cst_20 = arith.constant dense<0.000000e+00> : vector<1x8xf32>
    %39 = tpu.matmul %37, %38, %cst_20 {dimension_numbers = #tpu.dot_dimension_numbers<[1], [1], [0], [0], [0, 0, 1, 0], [], []>} : vector<1x8xf32>, vector<8x8xf32>, vector<1x8xf32> -> vector<1x8xf32>
    %40 = vector.shape_cast %39 : vector<1x8xf32> to vector<1x1x8xf32>
    %c0_21 = arith.constant 0 : index
    %c0_22 = arith.constant 0 : index
    %c0_23 = arith.constant 0 : index
    %41 = vector.load %arg7[%c0_21, %c0_22, %c0_23] : memref<1x1x8xf32, #tpu.memory_space<vmem>>, vector<1x1x8xf32>
    tpu.vector_store %arg7[%c0_21, %c0_22, %c0_23], %40 {strides = array<i32>} : memref<1x1x8xf32, #tpu.memory_space<vmem>>, vector<1x1x8xf32>,
    %42 = arith.mulf %23, %36 : vector<8x8xf32>
    %cst_24 = arith.constant dense<0.000000e+00> : vector<1x8xf32>
    %43 = tpu.matmul %37, %42, %cst_24 {dimension_numbers = #tpu.dot_dimension_numbers<[1], [1], [0], [0], [0, 0, 1, 0], [], []>} : vector<1x8xf32>, vector<8x8xf32>, vector<1x8xf32> -> vector<1x8xf32>
    %44 = vector.shape_cast %43 : vector<1x8xf32> to vector<1x1x8xf32>
    %c0_25 = arith.constant 0 : index
    %c0_26 = arith.constant 0 : index
    %c0_27 = arith.constant 0 : index
    %45 = vector.load %arg8[%c0_25, %c0_26, %c0_27] : memref<1x1x8xf32, #tpu.memory_space<vmem>>, vector<1x1x8xf32>
    tpu.vector_store %arg8[%c0_25, %c0_26, %c0_27], %44 {strides = array<i32>} : memref<1x1x8xf32, #tpu.memory_space<vmem>>, vector<1x1x8xf32>,
    return
  }
  func.func @transform_0(%arg0: i32) -> (i32, i32) {
    %c0_i32 = arith.constant 0 : i32
    %c0_i32_0 = arith.constant 0 : i32
    %c0_i32_1 = arith.constant 0 : i32
    return %c0_i32, %c0_i32_0 : i32, i32
  }
  func.func @transform_1(%arg0: i32) -> (i32, i32) {
    %c0_i32 = arith.constant 0 : i32
    %c0_i32_0 = arith.constant 0 : i32
    return %arg0, %c0_i32 : i32, i32
  }
  func.func @transform_2(%arg0: i32) -> (i32, i32) {
    %c0_i32 = arith.constant 0 : i32
    %c0_i32_0 = arith.constant 0 : i32
    %c0_i32_1 = arith.constant 0 : i32
    return %c0_i32, %c0_i32_0 : i32, i32
  }
  func.func @transform_3(%arg0: i32) -> (i32, i32) {
    %c0_i32 = arith.constant 0 : i32
    %c0_i32_0 = arith.constant 0 : i32
    return %arg0, %c0_i32 : i32, i32
  }
  func.func @transform_4(%arg0: i32) -> (i32, i32) {
    %c0_i32 = arith.constant 0 : i32
    %c0_i32_0 = arith.constant 0 : i32
    %c0_i32_1 = arith.constant 0 : i32
    return %c0_i32, %c0_i32_0 : i32, i32
  }
  func.func @transform_5(%arg0: i32) -> (i32, i32, i32) {
    %c0_i32 = arith.constant 0 : i32
    %c0_i32_0 = arith.constant 0 : i32
    %c0_i32_1 = arith.constant 0 : i32
    return %arg0, %c0_i32, %c0_i32_0 : i32, i32, i32
  }
  func.func @transform_6(%arg0: i32) -> (i32, i32, i32) {
    %c0_i32 = arith.constant 0 : i32
    %c0_i32_0 = arith.constant 0 : i32
    %c0_i32_1 = arith.constant 0 : i32
    return %arg0, %c0_i32, %c0_i32_0 : i32, i32, i32
  }
  func.func @transform_7(%arg0: i32) -> (i32, i32, i32) {
    %c0_i32 = arith.constant 0 : i32
    %c0_i32_0 = arith.constant 0 : i32
    %c0_i32_1 = arith.constant 0 : i32
    return %arg0, %c0_i32, %c0_i32_0 : i32, i32, i32
  }
}

</mosaic_0001>

<llo_original>
// kernel: tpu_custom_call.1
$region0: #{tpu_custom_call.1}
  #allocation0 [shape = 'u32[]', space=smem, size = 0x4, offset = 0x4, fixed_abs, tag = 'smem constant byte address 0x4 - core index']
  #allocation1 [shape = 'u32[144,128]{1,0:T(1,128)}', space=vmem, size = 0x12000, scoped, tag = 'internal scratch']
  %s0 = inlined_call_operand.hbm [shape: f32[8,128], index: 0, kind: input, shape index: {}]
  %s1 = inlined_call_operand.hbm [shape: f32[8,1], index: 1, kind: input, shape index: {}]
  %s2 = inlined_call_operand.hbm [shape: f32[1,8], index: 2, kind: input, shape index: {}]
  %s3 = inlined_call_operand.hbm [shape: s32[8,1], index: 3, kind: input, shape index: {}]
  %s4 = inlined_call_operand.hbm [shape: s32[1,8], index: 4, kind: input, shape index: {}]
  %s5 = inlined_call_operand.hbm [shape: f32[1,8,8], index: 5, kind: input, shape index: {}]
  %s6 = inlined_call_operand.hbm [shape: f32[1,1,8], index: 6, kind: output, shape index: {0}]
  %s7 = inlined_call_operand.hbm [shape: f32[1,1,8], index: 7, kind: output, shape index: {1}]
  %8 = xla_tuple %s6, %s7
  %s9 = sld [smem:[#allocation0]]
  $region66: #{tpu_custom_call.1} parent=0
    _
  %s11 = ssub.s32 1, %s9
  %s12 = scalar_select 0, %s11, %s9
  $region1: #{tpu_custom_call.1} parent=0
    #allocation2 [shape = 'u8[4096]{0}', space=vmem, size = 0x1000, scoped, tag = 'input window, operand 0, single buffered']
    #allocation3 [shape = 's32[1]{0}', space=sflag, size = 0x4, scoped, tag = 'scoped memory for tpu_custom_call.1']
    #allocation4 [shape = 's32[1]{0}', space=sflag, size = 0x4, scoped, tag = 'scoped memory for tpu_custom_call.1']
    #allocation5 [shape = 'u8[4096]{0}', space=vmem, size = 0x1000, scoped, tag = 'input window, operand 1, single buffered']
    #allocation6 [shape = 's32[1]{0}', space=sflag, size = 0x4, scoped, tag = 'scoped memory for tpu_custom_call.1']
    #allocation7 [shape = 'u8[512]{0}', space=vmem, size = 0x400, scoped, tag = 'input window, operand 2, single buffered']
    #allocation8 [shape = 'u8[4096]{0}', space=vmem, size = 0x1000, scoped, tag = 'input window, operand 3, single buffered']
    #allocation9 [shape = 's32[1]{0}', space=sflag, size = 0x4, scoped, tag = 'scoped memory for tpu_custom_call.1']
    #allocation10 [shape = 'u8[512]{0}', space=vmem, size = 0x400, scoped, tag = 'input window, operand 4, single buffered']
    #allocation11 [shape = 'u8[4096]{0}', space=vmem, size = 0x1000, scoped, tag = 'input window, operand 5, single buffered']
    #allocation12 [shape = 's32[1]{0}', space=sflag, size = 0x4, scoped, tag = 'scoped memory for tpu_custom_call.1']
    #allocation13 [shape = 'u8[512]{0}', space=vmem, size = 0x400, scoped, tag = 'output window, operand 0, single buffered']
    #allocation14 [shape = 'u8[512]{0}', space=vmem, size = 0x400, scoped, tag = 'output window, operand 1, single buffered']
    #allocation15 [shape = 's32[1]{0}', space=sflag, size = 0x4, scoped, tag = 'scoped memory for tpu_custom_call.1']
    %13 = vsyncpa [#allocation3], 0
    %14 = vsyncpa [#allocation6], 0
    %15 = vsyncpa [#allocation9], 0
    %16 = vsyncpa [#allocation12], 0
    %17 = vsyncpa [#allocation4], 0
    %18 = vsyncpa [#allocation15], 0
    // Predicated region
    $region2: #{tpu_custom_call.1} parent=1 // pred_check
      _
    $region3: #{tpu_custom_call.1} parent=1 // pred_check_branch
      %20 = sbr.rel (0) target = $region5
    $region4: #{tpu_custom_call.1} parent=1 // pred_region
      %s22 = ssub.s32 128, 128
      %23 = vsyncadd [#allocation3], %s22
      %s25 = sshll.u32 [#allocation2], 4
      %s26 = int_to_ptr.vmem [resolvable:$true] %s25
      %28 = dma.hbm_to_vmem [thread:$0]  %s0, 128, %s26, [#allocation3]
    $region5: #{tpu_custom_call.1} parent=1 // pred_fallthru
      _
    // Predicated region
    $region6: #{tpu_custom_call.1} parent=1 // pred_check
      _
    $region7: #{tpu_custom_call.1} parent=1 // pred_check_branch
      %30 = sbr.rel (0) target = $region9
    $region8: #{tpu_custom_call.1} parent=1 // pred_region
      %s32 = ssub.s32 128, 128
      %33 = vsyncadd [#allocation6], %s32
      %s35 = sshll.u32 [#allocation5], 4
      %s36 = int_to_ptr.vmem [resolvable:$true] %s35
      %38 = dma.hbm_to_vmem [thread:$0]  %s1, 128, %s36, [#allocation6]
    $region9: #{tpu_custom_call.1} parent=1 // pred_fallthru
      _
    // Predicated region
    $region10: #{tpu_custom_call.1} parent=1 // pred_check
      _
    $region11: #{tpu_custom_call.1} parent=1 // pred_check_branch
      %40 = sbr.rel (0) target = $region13
    $region12: #{tpu_custom_call.1} parent=1 // pred_region
      %s42 = ssub.s32 16, 16
      %43 = vsyncadd [#allocation6], %s42
      %s45 = sshll.u32 [#allocation7], 4
      %s46 = int_to_ptr.vmem [resolvable:$true] %s45
      %48 = dma.hbm_to_vmem [thread:$0]  %s2, 16, %s46, [#allocation6]
    $region13: #{tpu_custom_call.1} parent=1 // pred_fallthru
      _
    // Predicated region
    $region14: #{tpu_custom_call.1} parent=1 // pred_check
      _
    $region15: #{tpu_custom_call.1} parent=1 // pred_check_branch
      %50 = sbr.rel (0) target = $region17
    $region16: #{tpu_custom_call.1} parent=1 // pred_region
      %s52 = ssub.s32 128, 128
      %53 = vsyncadd [#allocation9], %s52
      %s55 = sshll.u32 [#allocation8], 4
      %s56 = int_to_ptr.vmem [resolvable:$true] %s55
      %58 = dma.hbm_to_vmem [thread:$0]  %s3, 128, %s56, [#allocation9]
    $region17: #{tpu_custom_call.1} parent=1 // pred_fallthru
      _
    // Predicated region
    $region18: #{tpu_custom_call.1} parent=1 // pred_check
      _
    $region19: #{tpu_custom_call.1} parent=1 // pred_check_branch
      %60 = sbr.rel (0) target = $region21
    $region20: #{tpu_custom_call.1} parent=1 // pred_region
      %s62 = ssub.s32 16, 16
      %63 = vsyncadd [#allocation9], %s62
      %s65 = sshll.u32 [#allocation10], 4
      %s66 = int_to_ptr.vmem [resolvable:$true] %s65
      %68 = dma.hbm_to_vmem [thread:$0]  %s4, 16, %s66, [#allocation9]
    $region21: #{tpu_custom_call.1} parent=1 // pred_fallthru
      _
    // Predicated region
    $region22: #{tpu_custom_call.1} parent=1 // pred_check
      _
    $region23: #{tpu_custom_call.1} parent=1 // pred_check_branch
      %70 = sbr.rel (0) target = $region25
    $region24: #{tpu_custom_call.1} parent=1 // pred_region
      %s72 = ssub.s32 128, 128
      %73 = vsyncadd [#allocation12], %s72
      %s75 = sshll.u32 [#allocation11], 4
      %s76 = int_to_ptr.vmem [resolvable:$true] %s75
      %78 = dma.hbm_to_vmem [thread:$0]  %s5, 128, %s76, [#allocation12]
    $region25: #{tpu_custom_call.1} parent=1 // pred_fallthru
      _
    // Predicated region
    $region26: #{tpu_custom_call.1} parent=1 // pred_check
      _
    $region27: #{tpu_custom_call.1} parent=1 // pred_check_branch
      %80 = sbr.rel (0) target = $region29
    $region28: #{tpu_custom_call.1} parent=1 // pred_region
      %81 = dma.done [#allocation3], 128
    $region29: #{tpu_custom_call.1} parent=1 // pred_fallthru
      _
    // Predicated region
    $region30: #{tpu_custom_call.1} parent=1 // pred_check
      _
    $region31: #{tpu_custom_call.1} parent=1 // pred_check_branch
      %83 = sbr.rel (0) target = $region33
    $region32: #{tpu_custom_call.1} parent=1 // pred_region
      %84 = dma.done [#allocation6], 128
    $region33: #{tpu_custom_call.1} parent=1 // pred_fallthru
      _
    // Predicated region
    $region34: #{tpu_custom_call.1} parent=1 // pred_check
      _
    $region35: #{tpu_custom_call.1} parent=1 // pred_check_branch
      %86 = sbr.rel (0) target = $region37
    $region36: #{tpu_custom_call.1} parent=1 // pred_region
      %87 = dma.done [#allocation6], 16
    $region37: #{tpu_custom_call.1} parent=1 // pred_fallthru
      _
    // Predicated region
    $region38: #{tpu_custom_call.1} parent=1 // pred_check
      _
    $region39: #{tpu_custom_call.1} parent=1 // pred_check_branch
      %89 = sbr.rel (0) target = $region41
    $region40: #{tpu_custom_call.1} parent=1 // pred_region
      %90 = dma.done [#allocation9], 128
    $region41: #{tpu_custom_call.1} parent=1 // pred_fallthru
      _
    // Predicated region
    $region42: #{tpu_custom_call.1} parent=1 // pred_check
      _
    $region43: #{tpu_custom_call.1} parent=1 // pred_check_branch
      %92 = sbr.rel (0) target = $region45
    $region44: #{tpu_custom_call.1} parent=1 // pred_region
      %93 = dma.done [#allocation9], 16
    $region45: #{tpu_custom_call.1} parent=1 // pred_fallthru
      _
    // Predicated region
    $region46: #{tpu_custom_call.1} parent=1 // pred_check
      _
    $region47: #{tpu_custom_call.1} parent=1 // pred_check_branch
      %95 = sbr.rel (0) target = $region49
    $region48: #{tpu_custom_call.1} parent=1 // pred_region
      %96 = dma.done [#allocation12], 128
    $region49: #{tpu_custom_call.1} parent=1 // pred_fallthru
      _
    %v97 = vld [vmem:[#allocation2] sm:$0xff]
    %98 = vmatprep.subr.mxu0 0.0
    %99 = vmatpush1.xpose.msra.mxu0 %v97
    %100 = vmatprep.subr.mxu0 0.0
    %101 = vmatpush1.xpose.msra.mxu0 0.0
    %102 = vmatprep.subr.mxu0 0.0
    %103 = vmatpush1.xpose.msra.mxu0 0.0
    %104 = vmatprep.subr.mxu0 0.0
    %105 = vmatpush1.xpose.msra.mxu0 0.0
    %106 = vmatprep.subr.mxu0 0.0
    %107 = vmatpush1.xpose.msra.mxu0 0.0
    %108 = vmatprep.subr.mxu0 0.0
    %109 = vmatpush1.xpose.msra.mxu0 0.0
    %110 = vmatprep.subr.mxu0 0.0
    %111 = vmatpush1.xpose.msra.mxu0 0.0
    %112 = vmatprep.subr.mxu0 0.0
    %113 = vmatpush1.xpose.msra.mxu0 0.0
    %114 = vmatprep.subr.mxu0 0.0
    %115 = vmatpush1.xpose.msra.mxu0 0.0
    %116 = vmatprep.subr.mxu0 0.0
    %117 = vmatpush1.xpose.msra.mxu0 0.0
    %118 = vmatprep.subr.mxu0 0.0
    %119 = vmatpush1.xpose.msra.mxu0 0.0
    %120 = vmatprep.subr.mxu0 0.0
    %121 = vmatpush1.xpose.msra.mxu0 0.0
    %122 = vmatprep.subr.mxu0 0.0
    %123 = vmatpush1.xpose.msra.mxu0 0.0
    %124 = vmatprep.subr.mxu0 0.0
    %125 = vmatpush1.xpose.msra.mxu0 0.0
    %126 = vmatprep.subr.mxu0 0.0
    %127 = vmatpush1.xpose.msra.mxu0 0.0
    %128 = vmatprep.subr.mxu0 0.0
    %129 = vmatpush1.xpose.msra.mxu0 0.0
    %130 = vmatprep.subr.mxu0 0.0
    %131 = vmatpush1.xpose.msra.mxu0 0.0
    %132 = vmatprep.subr.mxu0 0.0
    %133 = vmatpush1.xpose.msra.mxu0 0.0
    %134 = vmatprep.subr.mxu0 0.0
    %135 = vmatpush1.xpose.msra.mxu0 0.0
    %136 = vmatprep.subr.mxu0 0.0
    %137 = vmatpush1.xpose.msra.mxu0 0.0
    %138 = vmatprep.subr.mxu0 0.0
    %139 = vmatpush1.xpose.msra.mxu0 0.0
    %140 = vmatprep.subr.mxu0 0.0
    %141 = vmatpush1.xpose.msra.mxu0 0.0
    %142 = vmatprep.subr.mxu0 0.0
    %143 = vmatpush1.xpose.msra.mxu0 0.0
    %144 = vmatprep.subr.mxu0 0.0
    %145 = vmatpush1.xpose.msra.mxu0 0.0
    %146 = vmatprep.subr.mxu0 0.0
    %147 = vmatpush1.xpose.msra.mxu0 0.0
    %148 = vmatprep.subr.mxu0 0.0
    %149 = vmatpush1.xpose.msra.mxu0 0.0
    %150 = vmatprep.subr.mxu0 0.0
    %151 = vmatpush1.xpose.msra.mxu0 0.0
    %152 = vmatprep.subr.mxu0 0.0
    %153 = vmatpush1.xpose.msra.mxu0 0.0
    %154 = vmatprep.subr.mxu0 0.0
    %155 = vmatpush1.xpose.msra.mxu0 0.0
    %156 = vmatprep.subr.mxu0 0.0
    %157 = vmatpush1.xpose.msra.mxu0 0.0
    %158 = vmatprep.subr.mxu0 0.0
    %159 = vmatpush1.xpose.msra.mxu0 0.0
    %160 = vmatprep.subr.mxu0 0.0
    %161 = vmatpush1.xpose.msra.mxu0 0.0
    %162 = vmatprep.mubr.f32.mxu0 0.0
    %163 = vmatmul.mubr.f32.gmra.mrb[0].mxu0 %v97
    %v164 = vpop.f32.mrb[0].mxu0
    %v165 = vadd.f32 0.0, %v164
    %v166 = vpop.f32.mrb[0].mxu0
    %167 = vdwg.mxu0
    %v168 = vld [vmem:[#allocation5] sm:$0xff]
    %v169 = vld [vmem:[#allocation7] sm:$0x1]
    %171 = vset.pattern.permute.xlu0 0
    %172 = vperm.xlu0 %171, %v168
    %v173 = vpop.permute.xlu0 %172
    %v176 = vlaneseq
    %v177 = vshrl.u32 %v176, 7
    %v178 = vsub.s32 0, %v177
    %v179 = vrot.slane %v169, %v178
    %v181 = vadd.f32 %v173, %v179
    %v182 = vmul.f32 %v165, 2.0
    %v183 = vsub.f32 %v181, %v182
    %v184 = vld [vmem:[#allocation8] sm:$0xff]
    %v185 = vld [vmem:[#allocation10] sm:$0x1]
    %186 = vset.pattern.permute.xlu0 0
    %187 = vperm.xlu0 %186, %v184
    %v188 = vpop.permute.xlu0 %187
    %v189 = vlaneseq
    %v190 = vshrl.u32 %v189, 7
    %v191 = vsub.s32 0, %v190
    %v192 = vrot.slane %v185, %v191
    %vm193 = vcmp.ne.s32.totalorder %v188, %v192
    %v194 = vsel %vm193, %v183, inf
    %vm195 = vcmask 64512
    %v196 = vsel %vm195, %v194, inf
    %197 = vmin.xlane.f32.xlu0 %v196
    %v198 = vpop.xlane.xlu0 %197
    %v199 = vmax.f32 %v198, 1e-12
    %v200 = vrsqrt.pop %v199
    %v201 = vmul.f32 %v199, %v200
    %vm202 = vcmp.eq.f32.partialorder %v199, inf
    %v203 = vsel %vm202, %v199, %v201
    %vm204 = vcmp.eq.f32.partialorder %v199, 0.0
    %v205 = vand.u32 %v199, 2147483648
    %v206 = vsel %vm204, %v205, %v203
    %v207 = vld [vmem:[#allocation11] sm:$0xff]
    %v208 = vmax.f32 %v183, 1e-12
    %v209 = vrsqrt.pop %v208
    %v210 = vmul.f32 %v208, %v209
    %vm211 = vcmp.eq.f32.partialorder %v208, inf
    %v212 = vsel %vm211, %v208, %v210
    %vm213 = vcmp.eq.f32.partialorder %v208, 0.0
    %v214 = vand.u32 %v208, 2147483648
    %v215 = vsel %vm213, %v214, %v212
    %v216 = vsub.f32 %v215, %v206
    %v217 = vadd.f32 %v216, 0.3
    %v218 = vmax.f32 %v217, 0.0
    %vm219 = vcmp.gt.f32.partialorder %v206, %v215
    %v220 = vsel %vm219, 1, 0
    %v221 = vcvt.s32.f32 %v220
    %v222 = vmul.f32 %v207, %v218
    %v224 = vsel %vm195, 1.0, 0
    %v227 = vsel %vm195, %v222, 0
    %229 = vmatprep.subr.mxu0 0.0
    %230 = vmatpush1.xpose.msra.mxu0 %v227
    %231 = vmatprep.subr.mxu0 0.0
    %232 = vmatpush1.xpose.msra.mxu0 0.0
    %233 = vmatprep.subr.mxu0 0.0
    %234 = vmatpush1.xpose.msra.mxu0 0.0
    %235 = vmatprep.subr.mxu0 0.0
    %236 = vmatpush1.xpose.msra.mxu0 0.0
    %237 = vmatprep.subr.mxu0 0.0
    %238 = vmatpush1.xpose.msra.mxu0 0.0
    %239 = vmatprep.subr.mxu0 0.0
    %240 = vmatpush1.xpose.msra.mxu0 0.0
    %241 = vmatprep.subr.mxu0 0.0
    %242 = vmatpush1.xpose.msra.mxu0 0.0
    %243 = vmatprep.subr.mxu0 0.0
    %244 = vmatpush1.xpose.msra.mxu0 0.0
    %245 = vmatprep.subr.mxu0 0.0
    %246 = vmatpush1.xpose.msra.mxu0 0.0
    %247 = vmatprep.subr.mxu0 0.0
    %248 = vmatpush1.xpose.msra.mxu0 0.0
    %249 = vmatprep.subr.mxu0 0.0
    %250 = vmatpush1.xpose.msra.mxu0 0.0
    %251 = vmatprep.subr.mxu0 0.0
    %252 = vmatpush1.xpose.msra.mxu0 0.0
    %253 = vmatprep.subr.mxu0 0.0
    %254 = vmatpush1.xpose.msra.mxu0 0.0
    %255 = vmatprep.subr.mxu0 0.0
    %256 = vmatpush1.xpose.msra.mxu0 0.0
    %257 = vmatprep.subr.mxu0 0.0
    %258 = vmatpush1.xpose.msra.mxu0 0.0
    %259 = vmatprep.subr.mxu0 0.0
    %260 = vmatpush1.xpose.msra.mxu0 0.0
    %261 = vmatprep.subr.mxu0 0.0
    %262 = vmatpush1.xpose.msra.mxu0 0.0
    %263 = vmatprep.subr.mxu0 0.0
    %264 = vmatpush1.xpose.msra.mxu0 0.0
    %265 = vmatprep.subr.mxu0 0.0
    %266 = vmatpush1.xpose.msra.mxu0 0.0
    %267 = vmatprep.subr.mxu0 0.0
    %268 = vmatpush1.xpose.msra.mxu0 0.0
    %269 = vmatprep.subr.mxu0 0.0
    %270 = vmatpush1.xpose.msra.mxu0 0.0
    %271 = vmatprep.subr.mxu0 0.0
    %272 = vmatpush1.xpose.msra.mxu0 0.0
    %273 = vmatprep.subr.mxu0 0.0
    %274 = vmatpush1.xpose.msra.mxu0 0.0
    %275 = vmatprep.subr.mxu0 0.0
    %276 = vmatpush1.xpose.msra.mxu0 0.0
    %277 = vmatprep.subr.mxu0 0.0
    %278 = vmatpush1.xpose.msra.mxu0 0.0
    %279 = vmatprep.subr.mxu0 0.0
    %280 = vmatpush1.xpose.msra.mxu0 0.0
    %281 = vmatprep.subr.mxu0 0.0
    %282 = vmatpush1.xpose.msra.mxu0 0.0
    %283 = vmatprep.subr.mxu0 0.0
    %284 = vmatpush1.xpose.msra.mxu0 0.0
    %285 = vmatprep.subr.mxu0 0.0
    %286 = vmatpush1.xpose.msra.mxu0 0.0
    %287 = vmatprep.subr.mxu0 0.0
    %288 = vmatpush1.xpose.msra.mxu0 0.0
    %289 = vmatprep.subr.mxu0 0.0
    %290 = vmatpush1.xpose.msra.mxu0 0.0
    %291 = vmatprep.subr.mxu0 0.0
    %292 = vmatpush1.xpose.msra.mxu0 0.0
    %293 = vmatprep.mubr.f32.mxu0 0.0
    %294 = vmatmul.mubr.f32.gmra.mrb[0].mxu0 %v224
    %v295 = vpop.f32.mrb[0].mxu0
    %v296 = vadd.f32 0.0, %v295
    %v297 = vpop.f32.mrb[0].mxu0
    %298 = vdwg.mxu0
    %vm299 = vcmask 57344
    %300 = vst.msk [vmem:[#allocation13] sm:$0x1] %vm299, %v296
    %v301 = vmul.f32 %v207, %v221
    %v303 = vsel %vm195, %v301, 0
    %305 = vmatprep.subr.mxu0 0.0
    %306 = vmatpush1.xpose.msra.mxu0 %v303
    %307 = vmatprep.subr.mxu0 0.0
    %308 = vmatpush1.xpose.msra.mxu0 0.0
    %309 = vmatprep.subr.mxu0 0.0
    %310 = vmatpush1.xpose.msra.mxu0 0.0
    %311 = vmatprep.subr.mxu0 0.0
    %312 = vmatpush1.xpose.msra.mxu0 0.0
    %313 = vmatprep.subr.mxu0 0.0
    %314 = vmatpush1.xpose.msra.mxu0 0.0
    %315 = vmatprep.subr.mxu0 0.0
    %316 = vmatpush1.xpose.msra.mxu0 0.0
    %317 = vmatprep.subr.mxu0 0.0
    %318 = vmatpush1.xpose.msra.mxu0 0.0
    %319 = vmatprep.subr.mxu0 0.0
    %320 = vmatpush1.xpose.msra.mxu0 0.0
    %321 = vmatprep.subr.mxu0 0.0
    %322 = vmatpush1.xpose.msra.mxu0 0.0
    %323 = vmatprep.subr.mxu0 0.0
    %324 = vmatpush1.xpose.msra.mxu0 0.0
    %325 = vmatprep.subr.mxu0 0.0
    %326 = vmatpush1.xpose.msra.mxu0 0.0
    %327 = vmatprep.subr.mxu0 0.0
    %328 = vmatpush1.xpose.msra.mxu0 0.0
    %329 = vmatprep.subr.mxu0 0.0
    %330 = vmatpush1.xpose.msra.mxu0 0.0
    %331 = vmatprep.subr.mxu0 0.0
    %332 = vmatpush1.xpose.msra.mxu0 0.0
    %333 = vmatprep.subr.mxu0 0.0
    %334 = vmatpush1.xpose.msra.mxu0 0.0
    %335 = vmatprep.subr.mxu0 0.0
    %336 = vmatpush1.xpose.msra.mxu0 0.0
    %337 = vmatprep.subr.mxu0 0.0
    %338 = vmatpush1.xpose.msra.mxu0 0.0
    %339 = vmatprep.subr.mxu0 0.0
    %340 = vmatpush1.xpose.msra.mxu0 0.0
    %341 = vmatprep.subr.mxu0 0.0
    %342 = vmatpush1.xpose.msra.mxu0 0.0
    %343 = vmatprep.subr.mxu0 0.0
    %344 = vmatpush1.xpose.msra.mxu0 0.0
    %345 = vmatprep.subr.mxu0 0.0
    %346 = vmatpush1.xpose.msra.mxu0 0.0
    %347 = vmatprep.subr.mxu0 0.0
    %348 = vmatpush1.xpose.msra.mxu0 0.0
    %349 = vmatprep.subr.mxu0 0.0
    %350 = vmatpush1.xpose.msra.mxu0 0.0
    %351 = vmatprep.subr.mxu0 0.0
    %352 = vmatpush1.xpose.msra.mxu0 0.0
    %353 = vmatprep.subr.mxu0 0.0
    %354 = vmatpush1.xpose.msra.mxu0 0.0
    %355 = vmatprep.subr.mxu0 0.0
    %356 = vmatpush1.xpose.msra.mxu0 0.0
    %357 = vmatprep.subr.mxu0 0.0
    %358 = vmatpush1.xpose.msra.mxu0 0.0
    %359 = vmatprep.subr.mxu0 0.0
    %360 = vmatpush1.xpose.msra.mxu0 0.0
    %361 = vmatprep.subr.mxu0 0.0
    %362 = vmatpush1.xpose.msra.mxu0 0.0
    %363 = vmatprep.subr.mxu0 0.0
    %364 = vmatpush1.xpose.msra.mxu0 0.0
    %365 = vmatprep.subr.mxu0 0.0
    %366 = vmatpush1.xpose.msra.mxu0 0.0
    %367 = vmatprep.subr.mxu0 0.0
    %368 = vmatpush1.xpose.msra.mxu0 0.0
    %369 = vmatprep.mubr.f32.mxu0 0.0
    %370 = vmatmul.mubr.f32.gmra.mrb[0].mxu0 %v224
    %v371 = vpop.f32.mrb[0].mxu0
    %v372 = vadd.f32 0.0, %v371
    %v373 = vpop.f32.mrb[0].mxu0
    %374 = vdwg.mxu0
    %375 = vst.msk [vmem:[#allocation14] sm:$0x1] %vm299, %v372
    // Predicated region
    $region50: #{tpu_custom_call.1} parent=1 // pred_check
      _
    $region51: #{tpu_custom_call.1} parent=1 // pred_check_branch
      %377 = sbr.rel (0) target = $region53
    $region52: #{tpu_custom_call.1} parent=1 // pred_region
      %s379 = ssub.s32 16, 16
      %380 = vsyncadd [#allocation4], %s379
      %s382 = sshll.u32 [#allocation13], 4
      %s383 = int_to_ptr.vmem [resolvable:$true] %s382
      %385 = dma.vmem_to_hbm [thread:$0]  %s383, 16, %s6, [#allocation4]
    $region53: #{tpu_custom_call.1} parent=1 // pred_fallthru
      _
    // Predicated region
    $region54: #{tpu_custom_call.1} parent=1 // pred_check
      _
    $region55: #{tpu_custom_call.1} parent=1 // pred_check_branch
      %387 = sbr.rel (0) target = $region57
    $region56: #{tpu_custom_call.1} parent=1 // pred_region
      %s389 = ssub.s32 16, 16
      %390 = vsyncadd [#allocation15], %s389
      %s392 = sshll.u32 [#allocation14], 4
      %s393 = int_to_ptr.vmem [resolvable:$true] %s392
      %395 = dma.vmem_to_hbm [thread:$0]  %s393, 16, %s7, [#allocation15]
    $region57: #{tpu_custom_call.1} parent=1 // pred_fallthru
      _
    // Predicated region
    $region58: #{tpu_custom_call.1} parent=1 // pred_check
      _
    $region59: #{tpu_custom_call.1} parent=1 // pred_check_branch
      %397 = sbr.rel (0) target = $region61
    $region60: #{tpu_custom_call.1} parent=1 // pred_region
      %398 = dma.done [#allocation4], 16
    $region61: #{tpu_custom_call.1} parent=1 // pred_fallthru
      _
    // Predicated region
    $region62: #{tpu_custom_call.1} parent=1 // pred_check
      _
    $region63: #{tpu_custom_call.1} parent=1 // pred_check_branch
      %400 = sbr.rel (0) target = $region65
    $region64: #{tpu_custom_call.1} parent=1 // pred_region
      %401 = dma.done [#allocation15], 16
    $region65: #{tpu_custom_call.1} parent=1 // pred_fallthru
      _
    %402 = vsyncpa [#allocation3], 1
    %403 = vsyncpa [#allocation6], 1
    %404 = vsyncpa [#allocation9], 1
    %405 = vsyncpa [#allocation12], 1
    %406 = vsyncpa [#allocation4], 1
    %407 = vsyncpa [#allocation15], 1

</llo_original>
